<compile_context>
chip_gen: v7x
topology: tpu7x:2x2x1
jax: 0.10.0
libtpu: 0.0.40
codegen_flags: <defaults>
</compile_context>

<pallas_src>
import functools

import jax
import jax.numpy as jnp
from jax.experimental import pallas as pl
from jax.experimental.pallas import tpu as pltpu

_LANE = 128
_TARGET_STEP_BYTES = 4 * 1024 * 1024     # ~4 MiB of HBM traffic per grid step
_VMEM_BUDGET_BYTES = 24 * 1024 * 1024    # double-buffered tiles must fit here
_VMEM_LIMIT_BYTES = 32 * 1024 * 1024     # scoped VMEM limit we request
_MAX_T_HW = 65536


def _round_up(x, m):
    return ((x + m - 1) // m) * m


def _round_down(x, m):
    return (x // m) * m


def _focal_kernel(*refs, gamma, use_alpha, hw, t_hw, inner_steps, split,
                  need_mask):
    # refs (inputs..., out):
    #   logits_ref: (C, t_hw)   classes on sublanes, pixels on lanes
    #   target_ref: (1, t_hw)   int32 class index per pixel
    #   alpha_ref : (C, 1)      only present when use_alpha
    #   out_ref   : (1, t_hw)   per-lane partial sums, resident across inner axis
    if use_alpha:
        logits_ref, target_ref, alpha_ref, out_ref = refs
    else:
        logits_ref, target_ref, out_ref = refs
        alpha_ref = None

    j = pl.program_id(1)

    x = logits_ref[...].astype(jnp.float32)                    # (C, t_hw)
    t = target_ref[...]                                        # (1, t_hw)
    C = x.shape[0]

    valid = None
    if need_mask:
        # Global pixel-block index of this grid step (raw, unclamped).
        if split:
            blk = pl.program_id(0) * inner_steps + j
        else:
            blk = j
        rem = hw - blk * t_hw                                  # may be <= 0
        col = jax.lax.broadcasted_iota(jnp.int32, (1, t_hw), 1)
        valid = col < rem                                      # (1, t_hw) bool
        # Kill unspecified padded lanes BEFORE the exp/log chain so they
        # cannot produce NaN/Inf anywhere downstream.
        x = jnp.where(valid, x, 0.0)

    # log-softmax along the class (sublane) axis, computed directly.
    m = jnp.max(x, axis=0, keepdims=True)                      # (1, t_hw)
    z = x - m                                                  # (C, t_hw)
    log_denom = jnp.log(jnp.sum(jnp.exp(z), axis=0, keepdims=True))

    # gather z at the target class via one-hot over sublanes.
    cls = jax.lax.broadcasted_iota(jnp.int32, x.shape, 0)
    onehot = cls == t                                          # (C, t_hw)
    z_t = jnp.sum(jnp.where(onehot, z, 0.0), axis=0, keepdims=True)

    log_pt = z_t - log_denom                                   # (1, t_hw)
    pt = jnp.exp(log_pt)

    log_gt = log_pt
    if use_alpha:
        alpha_t = jnp.sum(jnp.where(onehot, alpha_ref[...], 0.0),
                          axis=0, keepdims=True)
        log_gt = log_gt * alpha_t

    if gamma == 0.0:
        loss = -log_gt
    else:
        omp = jnp.maximum(1.0 - pt, 0.0)          # clamp fp rounding
        if gamma == 1.0:
            focal = omp                           # no transcendentals
        elif gamma == 2.0:
            focal = omp * omp                     # no transcendentals
        else:
            focal = jnp.exp(gamma * jnp.log(omp))  # omp ** gamma, 0 -> 0
        loss = -focal * log_gt                    # (1, t_hw)

    if need_mask:
        # jnp.where (not multiply) so any remaining non-finite garbage in
        # masked lanes cannot survive (NaN * 0 == NaN, but where selects 0).
        loss = jnp.where(valid, loss, 0.0)

    @pl.when(j == 0)
    def _init():
        out_ref[...] = jnp.zeros_like(out_ref)

    out_ref[...] += loss


def _pick_t_hw(C, HW, requested):
    """Lane-tile size: ~4 MiB HBM per step, clamped by VMEM and by HW."""
    # HBM bytes per lane per step: C logits + 1 target, f32/int32.
    t_target = _round_down(max(_TARGET_STEP_BYTES // ((C + 1) * 4), _LANE),
                           _LANE)
    # VMEM bytes per lane: double-buffered logits + target, resident output.
    per_lane_vmem = (2 * C + 2 + 2) * 4
    if per_lane_vmem * _LANE > _VMEM_BUDGET_BYTES:
        # TODO(synk): very large C needs a classes-on-lanes streaming
        # log-sum-exp over C tiles; not implemented.
        raise NotImplementedError(
            f"C={C} too large to fit a (C, 128) block in the VMEM budget")
    t_vmem = _round_down(_VMEM_BUDGET_BYTES // per_lane_vmem, _LANE)
    t_hw = min(t_target, t_vmem, _MAX_T_HW, _round_up(HW, _LANE))
    if requested is not None:
        req = _round_up(max(int(requested), _LANE), _LANE)
        t_hw = min(req, t_vmem, _round_up(HW, _LANE))
    return max(t_hw, _LANE)


def cross_entropy_focal_loss(logits, target, alpha=None, gamma=0.2,
                             reduction="mean", t_hw=None):
    """Pallas implementation of CrossEntropyFocalLoss.forward."""
    if reduction not in ("mean", "sum"):
        # TODO(synk): reduction='none' (unreduced per-element output) not implemented in-kernel.
        raise NotImplementedError("only 'mean' and 'sum' reductions supported")
    gamma = float(gamma)
    if gamma < 0.0:
        raise ValueError("gamma must be >= 0 (log(0) would produce inf)")

    if logits.ndim > 2:
        N, C = logits.shape[0], logits.shape[1]
        x = logits.reshape(N, C, -1)              # NCHW -> (N, C, H*W): free reshape
    else:
        # TODO(synk): the 2-D (M, C) path transposes on the host and keeps all
        # C classes in one VMEM block; large-vocab C needs a streaming
        # classes-on-lanes log-sum-exp variant.
        C = logits.shape[1]
        x = jnp.transpose(logits, (1, 0))[None]   # (M, C) -> (1, C, M)
        N = 1
    HW = x.shape[2]
    M = N * HW
    t = target.reshape(N, 1, HW).astype(jnp.int32)

    t_hw = _pick_t_hw(C, HW, t_hw)
    num_j = pl.cdiv(HW, t_hw)

    use_alpha = alpha is not None

    # Grid: batch axis is "parallel". When N == 1 the pixel axis is split
    # into (outer_parallel, inner_arbitrary) so both v7x TensorCores work.
    split = (N == 1)
    if split:
        n_outer = 2 if num_j >= 2 else 1
        inner = pl.cdiv(num_j, n_outer)
        grid = (n_outer, inner)
        need_mask = (n_outer * inner * t_hw != HW)
        last_blk = num_j - 1

        def block_idx(o, j):
            # Clamp so we never DMA past the array; the kernel's lane mask
            # (computed from the *unclamped* index) zeroes any duplicate.
            return jnp.minimum(o * inner + j, last_blk)

        logits_spec = pl.BlockSpec((None, C, t_hw),
                                   lambda o, j: (0, 0, block_idx(o, j)))
        target_spec = pl.BlockSpec((None, 1, t_hw),
                                   lambda o, j: (0, 0, block_idx(o, j)))
        out_spec = pl.BlockSpec((None, 1, t_hw), lambda o, j: (o, 0, 0))
        out_rows = n_outer
        inner_steps = inner
    else:
        grid = (N, num_j)
        need_mask = (num_j * t_hw != HW)
        logits_spec = pl.BlockSpec((None, C, t_hw), lambda n, j: (n, 0, j))
        target_spec = pl.BlockSpec((None, 1, t_hw), lambda n, j: (n, 0, j))
        out_spec = pl.BlockSpec((None, 1, t_hw), lambda n, j: (n, 0, 0))
        out_rows = N
        inner_steps = num_j

    in_specs = [logits_spec, target_spec]
    args = [x, t]
    if use_alpha:
        alpha_arr = jnp.asarray(alpha, jnp.float32).reshape(C, 1)
        in_specs.append(pl.BlockSpec((C, 1), lambda *_: (0, 0)))
        args.append(alpha_arr)

    kernel = functools.partial(
        _focal_kernel, gamma=gamma, use_alpha=use_alpha, hw=HW, t_hw=t_hw,
        inner_steps=inner_steps, split=split, need_mask=need_mask)

    cost = pl.CostEstimate(
        flops=int(M * (6 * C + 12)),
        transcendentals=int(M * (C + 4)),
        bytes_accessed=int(N * C * HW * 4 + N * HW * 4
                           + out_rows * t_hw * 4 + (C * 4 if use_alpha else 0)),
    )

    partial_sums = pl.pallas_call(
        kernel,
        out_shape=jax.ShapeDtypeStruct((out_rows, 1, t_hw), jnp.float32),
        grid_spec=pltpu.PrefetchScalarGridSpec(
            num_scalar_prefetch=0,
            grid=grid,
            in_specs=in_specs,
            out_specs=out_spec,
        ),
        compiler_params=pltpu.CompilerParams(
            dimension_semantics=("parallel", "arbitrary"),
            vmem_limit_bytes=_VMEM_LIMIT_BYTES),
        cost_estimate=cost,
    )(*args)

    total = jnp.sum(partial_sums)
    if reduction == "mean":
        return total / jnp.float32(M)
    return total


def _ref_loss(logits, target, alpha, gamma, reduction):
    """Pure-JAX reference mirroring the PyTorch module."""
    if logits.ndim > 2:
        Nn, Cc = logits.shape[0], logits.shape[1]
        x = logits.reshape(Nn, Cc, -1)
        x = jnp.transpose(x, (0, 2, 1)).reshape(-1, Cc)
    else:
        x = logits
    t = target.reshape(-1)
    p = jax.nn.softmax(x, axis=1)
    pt = jnp.take_along_axis(p, t[:, None], axis=1)[:, 0]
    log_gt = jnp.log(pt)
    if alpha is not None:
        log_gt = log_gt * jnp.asarray(alpha, jnp.float32)[t]
    loss = -1.0 * (1.0 - pt) ** gamma * log_gt
    return loss.mean() if reduction == "mean" else loss.sum()


if __name__ == "__main__":
    key = jax.random.PRNGKey(0)
    k1, k2, k3, k4, k5, k6 = jax.random.split(key, 6)

    # main example: NCHW segmentation logits, mean reduction, no alpha
    N, C, H, W = 2, 4, 16, 16
    logits = jax.random.normal(k1, (N, C, H, W), jnp.float32)
    target = jax.random.randint(k2, (N, H, W), 0, C)

    loss = cross_entropy_focal_loss(logits, target, alpha=None,
                                    gamma=0.2, reduction="mean")
    loss = jax.block_until_ready(loss)
    ref = _ref_loss(logits, target, None, 0.2, "mean")
    assert jnp.allclose(loss, ref, rtol=1e-5, atol=1e-6), (float(loss), float(ref))

    # second check: non-multiple-of-128 spatial size (exercises the in-kernel
    # ragged-tail mask, no host pad), per-class alpha, sum reduction
    H2, W2 = 10, 10
    logits2 = jax.random.normal(k3, (N, C, H2, W2), jnp.float32)
    target2 = jax.random.randint(k4, (N, H2, W2), 0, C)
    alpha = jnp.array([0.25, 0.5, 0.75, 1.0], jnp.float32)
    loss2 = cross_entropy_focal_loss(logits2, target2, alpha=alpha,
                                     gamma=0.2, reduction="sum")
    loss2 = jax.block_until_ready(loss2)
    ref2 = _ref_loss(logits2, target2, alpha, 0.2, "sum")
    assert jnp.allclose(loss2, ref2, rtol=1e-5, atol=1e-5), (float(loss2), float(ref2))

    # third check: 2-D (M, C) input with N==1 pixel-split grid, clamped
    # duplicate tail block, and the gamma==2 special case (forced small tile
    # to exercise multiple inner steps at a small shape)
    M3, C3 = 300, 4
    logits3 = jax.random.normal(k5, (M3, C3), jnp.float32)
    target3 = jax.random.randint(k6, (M3,), 0, C3)
    loss3 = cross_entropy_focal_loss(logits3, target3, alpha=alpha,
                                     gamma=2.0, reduction="mean", t_hw=128)
    loss3 = jax.block_until_ready(loss3)
    ref3 = _ref_loss(logits3, target3, alpha, 2.0, "mean")
    assert jnp.allclose(loss3, ref3, rtol=1e-5, atol=1e-6), (float(loss3), float(ref3))

    print("KERNEL_OK")
</pallas_src>

<mosaic_0001>
module attributes {stable_mosaic.version = 11 : i64} {
  func.func @_focal_kernel(%arg0: i32, %arg1: i32, %arg2: memref<1x4x256xf32, #tpu.memory_space<vmem>>, %arg3: memref<1x1x256xi32, #tpu.memory_space<vmem>>, %arg4: memref<1x1x256xf32, #tpu.memory_space<vmem>>) attributes {dimension_semantics = [#tpu.dimension_semantics<parallel>, #tpu.dimension_semantics<arbitrary>], iteration_bounds = array<i64: 2, 1>, scalar_prefetch = 0 : i64, scratch_operands = 0 : i64, tpu.core_type = #tpu.core_type<tc>, window_params = [{transform_indices = @transform_0, window_bounds = array<i64: 1, 4, 256>}, {transform_indices = @transform_1, window_bounds = array<i64: 1, 1, 256>}, {transform_indices = @transform_2, window_bounds = array<i64: 1, 1, 256>}]} {
    %c0 = arith.constant 0 : index
    %c0_0 = arith.constant 0 : index
    %c0_1 = arith.constant 0 : index
    %0 = vector.load %arg2[%c0, %c0_0, %c0_1] : memref<1x4x256xf32, #tpu.memory_space<vmem>>, vector<1x4x256xf32>
    %1 = vector.shape_cast %0 : vector<1x4x256xf32> to vector<4x256xf32>
    %c0_2 = arith.constant 0 : index
    %c0_3 = arith.constant 0 : index
    %c0_4 = arith.constant 0 : index
    %2 = vector.load %arg3[%c0_2, %c0_3, %c0_4] : memref<1x1x256xi32, #tpu.memory_space<vmem>>, vector<1x1x256xi32>
    %3 = vector.shape_cast %2 : vector<1x1x256xi32> to vector<1x256xi32>
    %cst = arith.constant dense<0xFF800000> : vector<256xf32>
    %4 = vector.multi_reduction <maximumf>, %1, %cst [0] : vector<4x256xf32> to vector<256xf32>
    %5 = vector.shape_cast %4 : vector<256xf32> to vector<1x256xf32>
    %6 = vector.broadcast %5 : vector<1x256xf32> to vector<4x256xf32>
    %7 = arith.subf %1, %6 : vector<4x256xf32>
    %8 = math.exp %7 : vector<4x256xf32>
    %cst_5 = arith.constant dense<0.000000e+00> : vector<256xf32>
    %9 = vector.multi_reduction <add>, %8, %cst_5 [0] : vector<4x256xf32> to vector<256xf32>
    %10 = vector.shape_cast %9 : vector<256xf32> to vector<1x256xf32>
    %11 = math.log %10 : vector<1x256xf32>
    %12 = tpu.iota {dimensions = array<i32: 0>} : vector<4x256xi32>
    %13 = vector.broadcast %3 : vector<1x256xi32> to vector<4x256xi32>
    %14 = arith.cmpi eq, %12, %13 : vector<4x256xi32>
    %cst_6 = arith.constant 0.000000e+00 : f32
    %15 = vector.broadcast %cst_6 : f32 to vector<4x256xf32>
    %16 = arith.select %14, %7, %15 : vector<4x256xi1>, vector<4x256xf32>
    %cst_7 = arith.constant dense<0.000000e+00> : vector<256xf32>
    %17 = vector.multi_reduction <add>, %16, %cst_7 [0] : vector<4x256xf32> to vector<256xf32>
    %18 = vector.shape_cast %17 : vector<256xf32> to vector<1x256xf32>
    %19 = arith.subf %18, %11 : vector<1x256xf32>
    %20 = math.exp %19 : vector<1x256xf32>
    %cst_8 = arith.constant 1.000000e+00 : f32
    %21 = vector.broadcast %cst_8 : f32 to vector<1x256xf32>
    %22 = arith.subf %21, %20 : vector<1x256xf32>
    %cst_9 = arith.constant 0.000000e+00 : f32
    %23 = vector.broadcast %cst_9 : f32 to vector<1x256xf32>
    %24 = arith.maximumf %22, %23 : vector<1x256xf32>
    %25 = math.log %24 : vector<1x256xf32>
    %cst_10 = arith.constant 2.000000e-01 : f32
    %26 = vector.broadcast %cst_10 : f32 to vector<1x256xf32>
    %27 = arith.mulf %26, %25 : vector<1x256xf32>
    %28 = math.exp %27 : vector<1x256xf32>
    %cst_11 = arith.constant 0.000000e+00 : f32
    %29 = vector.broadcast %cst_11 : f32 to vector<1x256xf32>
    %30 = arith.subf %29, %28 : vector<1x256xf32>
    %31 = arith.mulf %30, %19 : vector<1x256xf32>
    %c0_i32 = arith.constant 0 : i32
    %32 = arith.cmpi eq, %arg1, %c0_i32 : i32
    %33 = arith.extui %32 : i1 to i32
    %c0_i32_12 = arith.constant 0 : i32
    %34 = arith.cmpi ne, %33, %c0_i32_12 : i32
    scf.if %34 {
      %cst_19 = arith.constant 0.000000e+00 : f32
      %41 = vector.broadcast %cst_19 : f32 to vector<1x256xf32>
      %c0_20 = arith.constant 0 : index
      %c0_21 = arith.constant 0 : index
      %c0_22 = arith.constant 0 : index
      %42 = vector.load %arg4[%c0_20, %c0_21, %c0_22] : memref<1x1x256xf32, #tpu.memory_space<vmem>>, vector<1x1x256xf32>
      %43 = vector.shape_cast %42 : vector<1x1x256xf32> to vector<1x256xf32>
      %44 = vector.shape_cast %41 : vector<1x256xf32> to vector<1x1x256xf32>
      tpu.vector_store %arg4[%c0_20, %c0_21, %c0_22], %44 {strides = array<i32>} : memref<1x1x256xf32, #tpu.memory_space<vmem>>, vector<1x1x256xf32>,
    } else {
    }
    %c0_13 = arith.constant 0 : index
    %c0_14 = arith.constant 0 : index
    %c0_15 = arith.constant 0 : index
    %35 = vector.load %arg4[%c0_13, %c0_14, %c0_15] : memref<1x1x256xf32, #tpu.memory_space<vmem>>, vector<1x1x256xf32>
    %36 = vector.shape_cast %35 : vector<1x1x256xf32> to vector<1x256xf32>
    %37 = arith.addf %36, %31 : vector<1x256xf32>
    %c0_16 = arith.constant 0 : index
    %c0_17 = arith.constant 0 : index
    %c0_18 = arith.constant 0 : index
    %38 = vector.load %arg4[%c0_16, %c0_17, %c0_18] : memref<1x1x256xf32, #tpu.memory_space<vmem>>, vector<1x1x256xf32>
    %39 = vector.shape_cast %38 : vector<1x1x256xf32> to vector<1x256xf32>
    %40 = vector.shape_cast %37 : vector<1x256xf32> to vector<1x1x256xf32>
    tpu.vector_store %arg4[%c0_16, %c0_17, %c0_18], %40 {strides = array<i32>} : memref<1x1x256xf32, #tpu.memory_space<vmem>>, vector<1x1x256xf32>,
    return
  }
  func.func @transform_0(%arg0: i32, %arg1: i32) -> (i32, i32, i32) {
    %c0_i32 = arith.constant 0 : i32
    %c0_i32_0 = arith.constant 0 : i32
    return %arg0, %c0_i32, %arg1 : i32, i32, i32
  }
  func.func @transform_1(%arg0: i32, %arg1: i32) -> (i32, i32, i32) {
    %c0_i32 = arith.constant 0 : i32
    %c0_i32_0 = arith.constant 0 : i32
    return %arg0, %c0_i32, %arg1 : i32, i32, i32
  }
  func.func @transform_2(%arg0: i32, %arg1: i32) -> (i32, i32, i32) {
    %c0_i32 = arith.constant 0 : i32
    %c0_i32_0 = arith.constant 0 : i32
    %c0_i32_1 = arith.constant 0 : i32
    return %arg0, %c0_i32, %c0_i32_0 : i32, i32, i32
  }
}

</mosaic_0001>

<llo_original>
// kernel: tpu_custom_call.1
$region0: #{tpu_custom_call.1}
  #allocation0 [shape = 'u32[]', space=smem, size = 0x4, offset = 0x4, fixed_abs, tag = 'smem constant byte address 0x4 - core index']
  #allocation1 [shape = 'u32[144,128]{1,0:T(1,128)}', space=vmem, size = 0x12000, scoped, tag = 'internal scratch']
  %s0 = inlined_call_operand.hbm [shape: f32[2,4,256], index: 0, kind: input, shape index: {}]
  %s1 = inlined_call_operand.hbm [shape: s32[2,1,256], index: 1, kind: input, shape index: {}]
  %s2 = inlined_call_operand.hbm [shape: f32[2,1,256], index: 2, kind: output, shape index: {}]
  %s3 = sld [smem:[#allocation0]]
  $region53: #{tpu_custom_call.1} parent=0
    _
  %s5 = ssub.s32 1, %s3
  %s6 = scalar_select 0, %s5, %s3
  $region1: #{tpu_custom_call.1} parent=0
    #allocation2 [shape = 'u8[8192]{0}', space=vmem, size = 0x2000, scoped, tag = 'input window, operand 0']
    #allocation3 [shape = 's32[2]{0}', space=sflag, size = 0x8, scoped, tag = 'scoped memory for tpu_custom_call.1']
    #allocation4 [shape = 's32[2]{0}', space=sflag, size = 0x8, scoped, tag = 'scoped memory for tpu_custom_call.1']
    #allocation5 [shape = 'u8[2048]{0}', space=vmem, size = 0x800, scoped, tag = 'input window, operand 1']
    #allocation6 [shape = 's32[2]{0}', space=sflag, size = 0x8, scoped, tag = 'scoped memory for tpu_custom_call.1']
    #allocation7 [shape = 'u8[2048]{0}', space=vmem, size = 0x800, scoped, tag = 'output window, operand 0']
    %7 = vsyncpa [#allocation3], 0
    %s8 = scalar_lea.sflag [#allocation3], 1
    %9 = vsyncpa %s8, 0
    %10 = vsyncpa [#allocation6], 0
    %s11 = scalar_lea.sflag [#allocation6], 1
    %12 = vsyncpa %s11, 0
    %13 = vsyncpa [#allocation4], 0
    %s14 = scalar_lea.sflag [#allocation4], 1
    %15 = vsyncpa %s14, 0
    loop: start=0, step=1, limit=4
    $region2: #{tpu_custom_call.1} parent=1 // loop_pre_header
      _
    $region3: #{tpu_custom_call.1} parent=1 // loop_header
      %s17 = sphi 0, %s21
      %p18 = scmp.ge.s32.totalorder %s17, 4
      %s24 = sphi 0, %s36
      %s25 = sphi 0, %s32
      %s26 = sphi 0, %s24
      %s27 = sphi 0, %s25
      %s28 = sphi 0, %s26
      %s29 = sphi 0, %s27
      %s41 = sphi 0, %s43
      %s44 = sphi 0, %s41
      %s45 = sphi 0, %s44
      %s61 = sphi 0, %s45
      %s69 = sphi 0, %s71
      %s72 = sphi 0, %s69
      %s73 = sphi 0, %s72
      %s89 = sphi 0, %s73
      %s95 = sphi 0, %s97
      %s98 = sphi 0, %s95
      %s99 = sphi 0, %s98
      %s115 = sphi 0, %s99
    $region4: #{tpu_custom_call.1} parent=1 // loop_header_branch
      %20 = sbr.rel (%p18) target = $region8
    $region5: #{tpu_custom_call.1} parent=1 // loop_body
      %s22 = ssub.s32 %s17, 1
      %s23 = ssub.s32 %s17, 2
      %s30 = sadd.s32 1, %s25
      %p31 = scmp.ge.s32.totalorder %s30, 1
      %s32 = scalar_select %p31, 0, %s30
      %s33 = sadd.s32 1, %s24
      %s34 = scalar_select %p31, %s33, %s24
      %p35 = scmp.ge.s32.totalorder %s34, 2
      %s36 = scalar_select %p35, 0, %s34
      %s37 = ssub.s32 %s24, %s36
      %s38 = ssub.s32 %s25, %s32
      %s39 = sor.u32 %s37, %s38
      %p40 = scmp.eq.s32.totalorder %s39, 0
      %s42 = sadd.s32 %s41, 1
      %s43 = scalar_select %p40, %s41, %s42
      %p46 = pneg %p40
      %p47 = scmp.eq.s32.totalorder %s17, 1
      %p48 = por %p46, %p47
      %p49 = scmp.ne.s32.totalorder %s41, %s44
      %p50 = scmp.eq.s32.totalorder %s17, 0
      %p51 = por %p49, %p50
      %p52 = scmp.ne.s32.totalorder %s41, %s44
      %p53 = scmp.eq.s32.totalorder %s22, 1
      %p54 = por %p52, %p53
      %p55 = scmp.ne.s32.totalorder %s44, %s45
      %p56 = scmp.eq.s32.totalorder %s22, 0
      %p57 = por %p55, %p56
      %p58 = scmp.ne.s32.totalorder %s44, %s45
      %p59 = scmp.eq.s32.totalorder %s23, 1
      %p60 = por %p58, %p59
      %p62 = scmp.ne.s32.totalorder %s45, %s61
      %p63 = scmp.eq.s32.totalorder %s23, 0
      %p64 = por %p62, %p63
      %s65 = ssub.s32 %s24, %s36
      %s66 = ssub.s32 %s25, %s32
      %s67 = sor.u32 %s65, %s66
      %p68 = scmp.eq.s32.totalorder %s67, 0
      %s70 = sadd.s32 %s69, 1
      %s71 = scalar_select %p68, %s69, %s70
      %p74 = pneg %p68
      %p75 = scmp.eq.s32.totalorder %s17, 1
      %p76 = por %p74, %p75
      %p77 = scmp.ne.s32.totalorder %s69, %s72
      %p78 = scmp.eq.s32.totalorder %s17, 0
      %p79 = por %p77, %p78
      %p80 = scmp.ne.s32.totalorder %s69, %s72
      %p81 = scmp.eq.s32.totalorder %s22, 1
      %p82 = por %p80, %p81
      %p83 = scmp.ne.s32.totalorder %s72, %s73
      %p84 = scmp.eq.s32.totalorder %s22, 0
      %p85 = por %p83, %p84
      %p86 = scmp.ne.s32.totalorder %s72, %s73
      %p87 = scmp.eq.s32.totalorder %s23, 1
      %p88 = por %p86, %p87
      %p90 = scmp.ne.s32.totalorder %s73, %s89
      %p91 = scmp.eq.s32.totalorder %s23, 0
      %p92 = por %p90, %p91
      %s93 = ssub.s32 %s24, %s36
      %p94 = scmp.eq.s32.totalorder %s93, 0
      %s96 = sadd.s32 %s95, 1
      %s97 = scalar_select %p94, %s95, %s96
      %p100 = pneg %p94
      %p101 = scmp.eq.s32.totalorder %s17, 1
      %p102 = por %p100, %p101
      %p103 = scmp.ne.s32.totalorder %s95, %s98
      %p104 = scmp.eq.s32.totalorder %s17, 0
      %p105 = por %p103, %p104
      %p106 = scmp.ne.s32.totalorder %s95, %s98
      %p107 = scmp.eq.s32.totalorder %s22, 1
      %p108 = por %p106, %p107
      %p109 = scmp.ne.s32.totalorder %s98, %s99
      %p110 = scmp.eq.s32.totalorder %s22, 0
      %p111 = por %p109, %p110
      %p112 = scmp.ne.s32.totalorder %s98, %s99
      %p113 = scmp.eq.s32.totalorder %s23, 1
      %p114 = por %p112, %p113
      %p116 = scmp.ne.s32.totalorder %s99, %s115
      %p117 = scmp.eq.s32.totalorder %s23, 0
      %p118 = por %p116, %p117
      %p119 = scmp.le.s32.totalorder 1, %s17
      %p120 = scmp.lt.s32.totalorder %s17, 3
      %p121 = pnand %p119, %p120
      %p122 = pneg %p121
      // Predicated region
      $region9: #{tpu_custom_call.1} parent=5 // pred_check
        _
      $region10: #{tpu_custom_call.1} parent=5 // pred_check_branch
        %124 = sbr.rel (%p121) target = $region12
      $region11: #{tpu_custom_call.1} parent=5 // pred_region
        %s125 = ssub.s32 %s17, 1
      $region12: #{tpu_custom_call.1} parent=5 // pred_fallthru
        _
      %p126 = scmp.lt.s32.totalorder %s17, 2
      // Predicated region
      $region13: #{tpu_custom_call.1} parent=5 // pred_check
        %p127 = pneg %p126
      $region14: #{tpu_custom_call.1} parent=5 // pred_check_branch
        %129 = sbr.rel (%p127) target = $region16
      $region15: #{tpu_custom_call.1} parent=5 // pred_region
        // Predicated region
        $region17: #{tpu_custom_call.1} parent=15 // pred_check
          %p130 = pneg %p51
        $region18: #{tpu_custom_call.1} parent=15 // pred_check_branch
          %132 = sbr.rel (%p130) target = $region20
        $region19: #{tpu_custom_call.1} parent=15 // pred_region
          %s133 = sand.u32 %s41, 1
          %s134 = scalar_lea.sflag [#allocation3], %s133
          %s135 = sand.u32 %s41, 1
          %s136 = smul.addr %s135, 8
          %s137 = scalar_lea.vmem [#allocation2], %s136
          %s138 = smul.u32 2, %s25
          %s140 = ssub.s32 128, 128
          %141 = vsyncadd %s134, %s140
          %s142 = smul.addr %s24, 2
          %s143 = sadd.s32 %s138, %s142
          %s144 = smul.addr %s143, 64
          %s145 = scalar_lea.hbm %s0, %s144
          %s147 = sshll.u32 %s137, 4
          %s148 = int_to_ptr.vmem [resolvable:$true] %s147
          %150 = dma.hbm_to_vmem [thread:$0]  %s145, 128, %s148, %s134
        $region20: #{tpu_custom_call.1} parent=15 // pred_fallthru
          _
        // Predicated region
        $region21: #{tpu_custom_call.1} parent=15 // pred_check
          %p151 = pneg %p79
        $region22: #{tpu_custom_call.1} parent=15 // pred_check_branch
          %153 = sbr.rel (%p151) target = $region24
        $region23: #{tpu_custom_call.1} parent=15 // pred_region
          %s154 = sand.u32 %s69, 1
          %s155 = scalar_lea.sflag [#allocation6], %s154
          %s156 = sand.u32 %s69, 1
          %s157 = smul.addr %s156, 2
          %s158 = scalar_lea.vmem [#allocation5], %s157
          %s159 = smul.u32 2, %s25
          %s161 = ssub.s32 32, 32
          %162 = vsyncadd %s155, %s161
          %s163 = smul.addr %s24, 2
          %s164 = sadd.s32 %s159, %s163
          %s165 = smul.addr %s164, 16
          %s166 = scalar_lea.hbm %s1, %s165
          %s168 = sshll.u32 %s158, 4
          %s169 = int_to_ptr.vmem [resolvable:$true] %s168
          %171 = dma.hbm_to_vmem [thread:$0]  %s166, 32, %s169, %s155
        $region24: #{tpu_custom_call.1} parent=15 // pred_fallthru
          _
      $region16: #{tpu_custom_call.1} parent=5 // pred_fallthru
        _
      %p172 = scmp.le.s32.totalorder 1, %s17
      %p173 = scmp.lt.s32.totalorder %s17, 3
      %p174 = pnand %p172, %p173
      %p175 = pneg %p174
      // Predicated region
      $region25: #{tpu_custom_call.1} parent=5 // pred_check
        _
      $region26: #{tpu_custom_call.1} parent=5 // pred_check_branch
        %177 = sbr.rel (%p174) target = $region28
      $region27: #{tpu_custom_call.1} parent=5 // pred_region
        %s178 = ssub.s32 %s17, 1
        %s179 = sand.u32 %s44, 1
        %s180 = scalar_lea.sflag [#allocation3], %s179
        %s181 = sand.u32 %s44, 1
        %s182 = smul.addr %s181, 8
        %s183 = scalar_lea.vmem [#allocation2], %s182
        // Predicated region
        $region29: #{tpu_custom_call.1} parent=27 // pred_check
          %p184 = pneg %p57
        $region30: #{tpu_custom_call.1} parent=27 // pred_check_branch
          %186 = sbr.rel (%p184) target = $region32
        $region31: #{tpu_custom_call.1} parent=27 // pred_region
          %187 = dma.done %s180, 128
        $region32: #{tpu_custom_call.1} parent=27 // pred_fallthru
          _
        %s188 = sand.u32 %s72, 1
        %s189 = scalar_lea.sflag [#allocation6], %s188
        %s190 = sand.u32 %s72, 1
        %s191 = smul.addr %s190, 2
        %s192 = scalar_lea.vmem [#allocation5], %s191
        // Predicated region
        $region33: #{tpu_custom_call.1} parent=27 // pred_check
          %p193 = pneg %p85
        $region34: #{tpu_custom_call.1} parent=27 // pred_check_branch
          %195 = sbr.rel (%p193) target = $region36
        $region35: #{tpu_custom_call.1} parent=27 // pred_region
          %196 = dma.done %s189, 32
        $region36: #{tpu_custom_call.1} parent=27 // pred_fallthru
          _
        %s197 = sand.u32 %s44, 1
        %s198 = scalar_lea.sflag [#allocation3], %s197
        %s199 = sand.u32 %s44, 1
        %s200 = smul.addr %s199, 8
        %s201 = scalar_lea.vmem [#allocation2], %s200
        %p202 = pneg %p57
        %p203 = pneg %p54
        %s204 = sand.u32 %s72, 1
        %s205 = scalar_lea.sflag [#allocation6], %s204
        %s206 = sand.u32 %s72, 1
        %s207 = smul.addr %s206, 2
        %s208 = scalar_lea.vmem [#allocation5], %s207
        %p209 = pneg %p85
        %p210 = pneg %p82
        %p211 = pneg %p111
        %p212 = pneg %p108
        %s213 = sand.u32 %s98, 1
        %s214 = scalar_lea.sflag [#allocation4], %s213
        %s215 = sand.u32 %s98, 1
        %s216 = smul.addr %s215, 2
        %s217 = scalar_lea.vmem [#allocation7], %s216
        %s218 = smul.u32 2, %s27
        %s219 = smul.u32 2, %s27
        %v220 = vld [vmem:[%s183] sm:$0xff]
        %v221 = vld [vmem:[%s192] sm:$0x3]
        %v223 = vcombine.high %v220, %v220
        %vm225 = vcmask 1043456
        %v226 = vsel %vm225, %v220, -inf
        %v227 = vrot.slane %v226, 4
        %v228 = vmax.f32 %v226, %v227
        %v229 = vrot.slane %v228, 2
        %v230 = vmax.f32 %v228, %v229
        %v231 = vrot.slane %v230, 1
        %v232 = vmax.f32 %v230, %v231
        %v233 = vsel %vm225, %v223, -inf
        %v234 = vrot.slane %v233, 4
        %v235 = vmax.f32 %v233, %v234
        %v236 = vrot.slane %v235, 2
        %v237 = vmax.f32 %v235, %v236
        %v238 = vrot.slane %v237, 1
        %v239 = vmax.f32 %v237, %v238
        %v242 = vcombine.low %v232, %v239
        %v244 = vsub.f32 %v220, %v242
        %v245 = vmul.f32 %v244, 1.442695
        %v246 = vpow.pop %v245
        %v248 = vcombine.high %v246, %v246
        %v250 = vsel %vm225, %v246, 0.0
        %v251 = vrot.slane %v250, 4
        %v252 = vadd.f32 %v250, %v251
        %v253 = vrot.slane %v252, 2
        %v254 = vadd.f32 %v252, %v253
        %v255 = vrot.slane %v254, 1
        %v256 = vadd.f32 %v254, %v255
        %v257 = vsel %vm225, %v248, 0.0
        %v258 = vrot.slane %v257, 4
        %v259 = vadd.f32 %v257, %v258
        %v260 = vrot.slane %v259, 2
        %v261 = vadd.f32 %v259, %v260
        %v262 = vrot.slane %v261, 1
        %v263 = vadd.f32 %v261, %v262
        %v264 = vlog2.pop %v256
        %v265 = vmul.f32 %v264, 0.6931472
        %v266 = vlog2.pop %v263
        %v267 = vmul.f32 %v266, 0.6931472
        %v268 = vlaneseq
        %v269 = vshrl.u32 %v268, 7
        %v270 = vlaneseq
        %v271 = vshrl.u32 %v270, 7
        %v272 = vsub.s32 0, %v271
        %v273 = vrot.slane %v221, %v272
        %v274 = vlaneseq
        %v275 = vshrl.u32 %v274, 7
        %v276 = vsub.s32 1, %v275
        %v277 = vrot.slane %v221, %v276
        %vm278 = vcmp.eq.s32.totalorder %v269, %v273
        %vm279 = vcmp.eq.s32.totalorder %v269, %v277
        %v281 = vcombine.high %v244, %v244
        %v283 = vsel %vm278, %v244, 0.0
        %v284 = vsel %vm279, %v281, 0.0
        %v285 = vsel %vm225, %v283, 0.0
        %v286 = vrot.slane %v285, 4
        %v287 = vadd.f32 %v285, %v286
        %v288 = vrot.slane %v287, 2
        %v289 = vadd.f32 %v287, %v288
        %v290 = vrot.slane %v289, 1
        %v291 = vadd.f32 %v289, %v290
        %v292 = vsel %vm225, %v284, 0.0
        %v293 = vrot.slane %v292, 4
        %v294 = vadd.f32 %v292, %v293
        %v295 = vrot.slane %v294, 2
        %v296 = vadd.f32 %v294, %v295
        %v297 = vrot.slane %v296, 1
        %v298 = vadd.f32 %v296, %v297
        %v299 = vsub.f32 %v291, %v265
        %v300 = vsub.f32 %v298, %v267
        %v301 = vmul.f32 %v299, 1.442695
        %v302 = vpow.pop %v301
        %v303 = vmul.f32 %v300, 1.442695
        %v304 = vpow.pop %v303
        %v305 = vsub.f32 1.0, %v302
        %v306 = vsub.f32 1.0, %v304
        %v307 = vmax.f32 %v305, 0.0
        %v308 = vmax.f32 %v306, 0.0
        %v309 = vlog2.pop %v307
        %v310 = vmul.f32 %v309, 0.6931472
        %v311 = vlog2.pop %v308
        %v312 = vmul.f32 %v311, 0.6931472
        %v313 = vmul.f32 %v310, 0.2
        %v314 = vmul.f32 %v312, 0.2
        %v315 = vmul.f32 %v313, 1.442695
        %v316 = vpow.pop %v315
        %v317 = vmul.f32 %v314, 1.442695
        %v318 = vpow.pop %v317
        %v319 = vsub.f32 0.0, %v316
        %v320 = vsub.f32 0.0, %v318
        %v321 = vmul.f32 %v319, %v299
        %v322 = vmul.f32 %v320, %v300
        %p323 = scmp.eq.s32.totalorder %s27, 0
        // Predicated region
        $region37: #{tpu_custom_call.1} parent=27 // pred_check
          %p324 = pneg %p323
        $region38: #{tpu_custom_call.1} parent=27 // pred_check_branch
          %326 = sbr.rel (%p324) target = $region40
        $region39: #{tpu_custom_call.1} parent=27 // pred_region
          %v327 = vlaneseq
          %vm328 = vcmp.ge.s32.totalorder %v327, 0
          %vm329 = vcmp.lt.s32.totalorder %v327, 256
          %vm330 = vmand %vm328, %vm329
          %331 = vst.msk [vmem:[%s217] sm:$0x3] %vm330, 0.0
        $region40: #{tpu_custom_call.1} parent=27 // pred_fallthru
          _
        %v332 = vld [vmem:[%s217] sm:$0x3]
        %v335 = vcombine.low %v321, %v322
        %v337 = vunpack.c.l.s4 1966171168
        %v338 = vunpack.c.0.s8 %v337
        %v339 = vlaneseq
        %v340 = vshrl.u32 %v339, 7
        %v341 = vsub.s32 %v338, %v340
        %v342 = vrot.slane %v335, %v341
        %v344 = vunpack.c.l.s4 1966171168
        %v345 = vunpack.c.0.s8 %v344
        %v346 = vlaneseq
        %v347 = vshrl.u32 %v346, 7
        %v348 = vsub.s32 %v345, %v347
        %v349 = vrot.slane %v342, %v348
        %v351 = vadd.f32 %v332, %v349
        %v352 = vlaneseq
        %vm353 = vcmp.ge.s32.totalorder %v352, 0
        %vm354 = vcmp.lt.s32.totalorder %v352, 256
        %vm355 = vmand %vm353, %vm354
        %356 = vst.msk [vmem:[%s217] sm:$0x3] %vm355, %v351
        %s357 = sand.u32 %s98, 1
        %s358 = scalar_lea.sflag [#allocation4], %s357
        %s359 = sand.u32 %s98, 1
        %s360 = smul.addr %s359, 2
        %s361 = scalar_lea.vmem [#allocation7], %s360
        // Predicated region
        $region41: #{tpu_custom_call.1} parent=27 // pred_check
          %p362 = pneg %p108
        $region42: #{tpu_custom_call.1} parent=27 // pred_check_branch
          %364 = sbr.rel (%p362) target = $region44
        $region43: #{tpu_custom_call.1} parent=27 // pred_region
          %s366 = ssub.s32 32, 32
          %367 = vsyncadd %s358, %s366
          %s368 = smul.addr %s26, 2
          %s369 = smul.addr %s368, 16
          %s370 = scalar_lea.hbm %s2, %s369
          %s372 = sshll.u32 %s361, 4
          %s373 = int_to_ptr.vmem [resolvable:$true] %s372
          %375 = dma.vmem_to_hbm [thread:$0]  %s373, 32, %s370, %s358
        $region44: #{tpu_custom_call.1} parent=27 // pred_fallthru
          _
      $region28: #{tpu_custom_call.1} parent=5 // pred_fallthru
        _
      %p376 = scmp.le.s32.totalorder 2, %s17
      // Predicated region
      $region45: #{tpu_custom_call.1} parent=5 // pred_check
        %p377 = pneg %p376
      $region46: #{tpu_custom_call.1} parent=5 // pred_check_branch
        %379 = sbr.rel (%p377) target = $region48
      $region47: #{tpu_custom_call.1} parent=5 // pred_region
        %s380 = ssub.s32 %s17, 2
        // Predicated region
        $region49: #{tpu_custom_call.1} parent=47 // pred_check
          %p381 = pneg %p114
        $region50: #{tpu_custom_call.1} parent=47 // pred_check_branch
          %383 = sbr.rel (%p381) target = $region52
        $region51: #{tpu_custom_call.1} parent=47 // pred_region
          %s384 = sand.u32 %s99, 1
          %s385 = scalar_lea.sflag [#allocation4], %s384
          %s386 = sand.u32 %s99, 1
          %s387 = smul.addr %s386, 2
          %s388 = scalar_lea.vmem [#allocation7], %s387
          %389 = dma.done %s385, 32
        $region52: #{tpu_custom_call.1} parent=47 // pred_fallthru
          _
      $region48: #{tpu_custom_call.1} parent=5 // pred_fallthru
        _
    $region6: #{tpu_custom_call.1} parent=1 // loop_footer
      %s21 = sadd.s32 1, %s17
    $region7: #{tpu_custom_call.1} parent=1 // loop_footer_branch
      %16 = sbr.rel target = $region3
    $region8: #{tpu_custom_call.1} parent=1 // loop_exit
      _
    %390 = vsyncpa [#allocation3], 1
    %s391 = scalar_lea.sflag [#allocation3], 1
    %392 = vsyncpa %s391, 1
    %393 = vsyncpa [#allocation6], 1
    %s394 = scalar_lea.sflag [#allocation6], 1
    %395 = vsyncpa %s394, 1
    %396 = vsyncpa [#allocation4], 1
    %s397 = scalar_lea.sflag [#allocation4], 1
    %398 = vsyncpa %s397, 1

</llo_original>
